<compile_context>
chip_gen: v7x
topology: tpu7x:2x2x1
jax: 0.10.0
libtpu: 0.0.40
codegen_flags: <defaults>
</compile_context>

<pallas_src>
import jax
import jax.numpy as jnp
from jax.experimental import pallas as pl
from jax.experimental.pallas import tpu as pltpu


N_LAYERS = 6  # each head: 6 Linear layers, ReLU between all but the last


def _round_up(x, m):
    return ((x + m - 1) // m) * m


# ---------------------------------------------------------------------------
# Kernel: fused actor+critic MLP on one batch tile.
# ---------------------------------------------------------------------------
def fused_mlp_kernel(x_ref, w_ref, b_ref, out_ref):
    # x_ref:   [TILE_B, STATE_DIM]        f32 states (natural last dim)
    # w_ref:   [N_LAYERS, F_PAD, F_PAD]   bf16 block-diagonal fused weights
    # b_ref:   [N_LAYERS, 1, F_PAD]       f32 fused biases
    # out_ref: [TILE_B, OUT_COLS]         f32 [mu | V | zero pad]
    k0 = x_ref.shape[-1]          # static: true state_dim
    out_cols = out_ref.shape[-1]  # static: round_up(action_dim + 1, 8)

    h = x_ref[...]                # f32
    for i in range(N_LAYERS):
        w = w_ref[i]              # [F_PAD, F_PAD] bf16
        if i == 0:
            w = w[:k0, :]         # only the real input rows of layer 0
        # bf16 MXU operands, f32 accumulation; bias-add / ReLU stay f32 (VPU).
        h = jnp.dot(h.astype(jnp.bfloat16), w,
                    preferred_element_type=jnp.float32) + b_ref[i]
        if i < N_LAYERS - 1:
            h = jnp.maximum(h, 0.0)
    out_ref[...] = h[:, :out_cols]


# ---------------------------------------------------------------------------
# Parameter packing: two heads -> one block-diagonal slab per layer.
# Call ONCE at parameter-init time, not per forward.
# ---------------------------------------------------------------------------
def pack_params(actor_ws, actor_bs, critic_ws, critic_bs):
    # Fused per-layer shapes before padding:
    #   layer 0: [state_dim, a_out + c_out]   (both heads read the same input)
    #   layer i: [a_in + c_in, a_out + c_out] block-diagonal
    fused_ws, fused_bs = [], []
    for i in range(N_LAYERS):
        aw, cw = actor_ws[i], critic_ws[i]
        ab, cb = actor_bs[i].reshape(1, -1), critic_bs[i].reshape(1, -1)
        a_in, a_out = aw.shape
        c_in, c_out = cw.shape
        if i == 0:
            fw = jnp.concatenate([aw, cw], axis=1)              # [in, a_out+c_out]
        else:
            fw = jnp.zeros((a_in + c_in, a_out + c_out), jnp.float32)
            fw = fw.at[:a_in, :a_out].set(aw)
            fw = fw.at[a_in:, a_out:].set(cw)                   # exact zeros off-diag
        fb = jnp.concatenate([ab, cb], axis=1)                  # [1, a_out+c_out]
        fused_ws.append(fw)
        fused_bs.append(fb)

    max_dim = max(
        [w.shape[0] for w in fused_ws] + [w.shape[1] for w in fused_ws])
    f_pad = _round_up(max(max_dim, 128), 128)

    w_slab = jnp.zeros((N_LAYERS, f_pad, f_pad), jnp.float32)
    b_slab = jnp.zeros((N_LAYERS, 1, f_pad), jnp.float32)
    for i in range(N_LAYERS):
        kin, kout = fused_ws[i].shape
        w_slab = w_slab.at[i, :kin, :kout].set(fused_ws[i])
        b_slab = b_slab.at[i, :, :kout].set(fused_bs[i])
    # bf16 weights: native MXU dtype on v6e/v7x, halves VMEM/HBM footprint.
    return w_slab.astype(jnp.bfloat16), b_slab


# ---------------------------------------------------------------------------
# Tile choice: big tiles (amortize per-step overhead), but keep >= 2 grid
# steps when the batch allows it so the "parallel" axis can shard across
# v7x's two TensorCores.
# ---------------------------------------------------------------------------
def _choose_tile(batch, tile_b):
    rb = _round_up(batch, 8)
    n_tiles = pl.cdiv(rb, tile_b)
    if rb >= 16:
        n_tiles = max(n_tiles, 2)
    tb = _round_up(pl.cdiv(rb, n_tiles), 8)
    n_tiles = pl.cdiv(rb, tb)
    return tb, tb * n_tiles


# ---------------------------------------------------------------------------
# Wrapper (jit-friendly: all array args; shapes give the static config)
# ---------------------------------------------------------------------------
def actor_critic_forward(states, w_slab, b_slab, ln_sigma, tile_b=1024):
    B, state_dim = states.shape
    action_dim = ln_sigma.shape[-1]
    n_layers, f_pad, _ = w_slab.shape
    out_cols = _round_up(action_dim + 1, 8)

    tb, b_pad = _choose_tile(B, tile_b)
    # Only pad batch rows (cheap); lanes stay at the natural state_dim.
    x = states if b_pad == B else jnp.pad(states, ((0, b_pad - B), (0, 0)))

    grid = (b_pad // tb,)

    # VMEM budget (generous; never below the common 32 MiB default).
    w_bytes = w_slab.size * w_slab.dtype.itemsize
    b_bytes = b_slab.size * b_slab.dtype.itemsize
    est_vmem = (2 * (w_bytes + b_bytes)
                + 2 * tb * (state_dim + out_cols) * 4
                + 8 * tb * f_pad * 4)
    vmem_limit = int(min(64 << 20, max(32 << 20, 2 * est_vmem)))

    cost = pl.CostEstimate(
        flops=int(2 * b_pad * state_dim * f_pad
                  + 2 * b_pad * f_pad * f_pad * (n_layers - 1)),
        transcendentals=0,
        bytes_accessed=int(x.size * 4 + w_bytes + b_bytes
                           + b_pad * out_cols * 4),
    )

    out = pl.pallas_call(
        fused_mlp_kernel,
        out_shape=jax.ShapeDtypeStruct((b_pad, out_cols), jnp.float32),
        grid=grid,
        in_specs=[
            # states: natural last dim (== full array dim), batch tiled
            pl.BlockSpec((tb, state_dim), lambda i: (i, 0)),
            # weights / biases: constant index_map -> resident across steps
            pl.BlockSpec((n_layers, f_pad, f_pad), lambda i: (0, 0, 0)),
            pl.BlockSpec((n_layers, 1, f_pad), lambda i: (0, 0, 0)),
        ],
        out_specs=pl.BlockSpec((tb, out_cols), lambda i: (i, 0)),
        compiler_params=pltpu.CompilerParams(
            dimension_semantics=("parallel",),
            vmem_limit_bytes=vmem_limit),
        cost_estimate=cost,
    )(x, w_slab, b_slab)

    # Single narrow slice, then split.
    mu_v = out[:B, :action_dim + 1]
    mu = mu_v[:, :action_dim]
    v = mu_v[:, action_dim:action_dim + 1]
    # sigma is batch-independent: compute outside the kernel.
    sigma = jnp.broadcast_to(jnp.exp(ln_sigma.reshape(1, -1)), mu.shape)
    return mu, sigma, v


# ---------------------------------------------------------------------------
# Synthetic params / pure-JAX reference (mirrors the kernel's bf16 matmuls)
# ---------------------------------------------------------------------------
def init_params(key, state_dim, action_dim, hidden_dim, sigma=0.0):
    dims = [state_dim, hidden_dim // 2, hidden_dim // 4, hidden_dim // 8,
            hidden_dim // 16, hidden_dim // 32]

    def make_head(key, out_dim):
        sizes = dims + [out_dim]
        ws, bs = [], []
        for i in range(N_LAYERS):
            key, kw, kb = jax.random.split(key, 3)
            fan_in, fan_out = sizes[i], sizes[i + 1]
            ws.append(jax.random.normal(kw, (fan_in, fan_out), jnp.float32) * 0.1)
            bs.append(jax.random.normal(kb, (1, fan_out), jnp.float32) * 0.01)
        return key, ws, bs

    key, actor_ws, actor_bs = make_head(key, action_dim)
    key, critic_ws, critic_bs = make_head(key, 1)
    ln_sigma = jnp.full((1, action_dim), sigma, dtype=jnp.float32)
    return actor_ws, actor_bs, critic_ws, critic_bs, ln_sigma


def _mlp_ref(x, ws, bs):
    # Same numerics as the kernel: bf16 MXU operands, f32 accumulation.
    h = x
    for i in range(N_LAYERS):
        h = jnp.dot(h.astype(jnp.bfloat16), ws[i].astype(jnp.bfloat16),
                    preferred_element_type=jnp.float32) + bs[i]
        if i < N_LAYERS - 1:
            h = jnp.maximum(h, 0.0)
    return h


def _reference(states, actor_ws, actor_bs, critic_ws, critic_bs, ln_sigma):
    mu = _mlp_ref(states, actor_ws, actor_bs)
    v = _mlp_ref(states, critic_ws, critic_bs)
    sigma = jnp.broadcast_to(jnp.exp(ln_sigma), mu.shape)
    return mu, sigma, v


if __name__ == "__main__":
    # Small shapes; B=10 exercises batch-row padding and a 2-step grid.
    B, state_dim, action_dim, hidden_dim = 10, 16, 4, 128

    key = jax.random.PRNGKey(0)
    key, kx = jax.random.split(key)
    states = jax.random.normal(kx, (B, state_dim), jnp.float32)

    actor_ws, actor_bs, critic_ws, critic_bs, ln_sigma = init_params(
        key, state_dim, action_dim, hidden_dim, sigma=0.0)

    # Pack once (hoisted out of the per-forward path).
    w_slab, b_slab = pack_params(actor_ws, actor_bs, critic_ws, critic_bs)

    fwd = jax.jit(actor_critic_forward)
    mu, sigma, V = fwd(states, w_slab, b_slab, ln_sigma)
    jax.block_until_ready((mu, sigma, V))

    mu_ref, sigma_ref, v_ref = _reference(
        states, actor_ws, actor_bs, critic_ws, critic_bs, ln_sigma)

    assert mu.shape == (B, action_dim) and sigma.shape == (B, action_dim)
    assert V.shape == (B, 1)
    assert jnp.allclose(mu, mu_ref, atol=2e-3, rtol=2e-3), "mu mismatch"
    assert jnp.allclose(sigma, sigma_ref, atol=1e-6), "sigma mismatch"
    assert jnp.allclose(V, v_ref, atol=2e-3, rtol=2e-3), "V mismatch"

    print("KERNEL_OK")
</pallas_src>

<mosaic_0001>
module attributes {stable_mosaic.version = 11 : i64} {
  func.func @fused_mlp_kernel(%arg0: i32, %arg1: memref<8x16xf32, #tpu.memory_space<vmem>>, %arg2: memref<6x128x128xbf16, #tpu.memory_space<vmem>>, %arg3: memref<6x1x128xf32, #tpu.memory_space<vmem>>, %arg4: memref<8x8xf32, #tpu.memory_space<vmem>>) attributes {dimension_semantics = [#tpu.dimension_semantics<parallel>], iteration_bounds = array<i64: 2>, scalar_prefetch = 0 : i64, scratch_operands = 0 : i64, tpu.core_type = #tpu.core_type<tc>, window_params = [{transform_indices = @transform_0, window_bounds = array<i64: 8, 16>}, {pipeline_mode = #tpu.pipeline_mode<synchronous>, transform_indices = @transform_1, window_bounds = array<i64: 6, 128, 128>}, {pipeline_mode = #tpu.pipeline_mode<synchronous>, transform_indices = @transform_2, window_bounds = array<i64: 6, 1, 128>}, {transform_indices = @transform_3, window_bounds = array<i64: 8, 8>}]} {
    %c0 = arith.constant 0 : index
    %c0_0 = arith.constant 0 : index
    %0 = vector.load %arg1[%c0, %c0_0] : memref<8x16xf32, #tpu.memory_space<vmem>>, vector<8x16xf32>
    %c0_1 = arith.constant 0 : index
    %c0_2 = arith.constant 0 : index
    %c0_3 = arith.constant 0 : index
    %1 = vector.load %arg2[%c0_1, %c0_2, %c0_3] : memref<6x128x128xbf16, #tpu.memory_space<vmem>>, vector<1x128x128xbf16>
    %2 = vector.shape_cast %1 : vector<1x128x128xbf16> to vector<128x128xbf16>
    %3 = vector.extract_strided_slice %2 {offsets = [0, 0], sizes = [16, 128], strides = [1, 1]} : vector<128x128xbf16> to vector<16x128xbf16>
    %4 = arith.truncf %0 : vector<8x16xf32> to vector<8x16xbf16>
    %cst = arith.constant dense<0.000000e+00> : vector<8x128xf32>
    %5 = tpu.matmul %4, %3, %cst {dimension_numbers = #tpu.dot_dimension_numbers<[1], [0], [0], [1], [0, 0, 1, 1], [], []>} : vector<8x16xbf16>, vector<16x128xbf16>, vector<8x128xf32> -> vector<8x128xf32>
    %c0_4 = arith.constant 0 : index
    %c0_5 = arith.constant 0 : index
    %c0_6 = arith.constant 0 : index
    %6 = vector.load %arg3[%c0_4, %c0_5, %c0_6] : memref<6x1x128xf32, #tpu.memory_space<vmem>>, vector<1x1x128xf32>
    %7 = vector.shape_cast %6 : vector<1x1x128xf32> to vector<1x128xf32>
    %8 = vector.broadcast %7 : vector<1x128xf32> to vector<8x128xf32>
    %9 = arith.addf %5, %8 : vector<8x128xf32>
    %cst_7 = arith.constant 0.000000e+00 : f32
    %10 = vector.broadcast %cst_7 : f32 to vector<8x128xf32>
    %11 = arith.maximumf %9, %10 : vector<8x128xf32>
    %c1 = arith.constant 1 : index
    %c0_8 = arith.constant 0 : index
    %c0_9 = arith.constant 0 : index
    %12 = vector.load %arg2[%c1, %c0_8, %c0_9] : memref<6x128x128xbf16, #tpu.memory_space<vmem>>, vector<1x128x128xbf16>
    %13 = vector.shape_cast %12 : vector<1x128x128xbf16> to vector<128x128xbf16>
    %14 = arith.truncf %11 : vector<8x128xf32> to vector<8x128xbf16>
    %cst_10 = arith.constant dense<0.000000e+00> : vector<8x128xf32>
    %15 = tpu.matmul %14, %13, %cst_10 {dimension_numbers = #tpu.dot_dimension_numbers<[1], [0], [0], [1], [0, 0, 1, 1], [], []>} : vector<8x128xbf16>, vector<128x128xbf16>, vector<8x128xf32> -> vector<8x128xf32>
    %c1_11 = arith.constant 1 : index
    %c0_12 = arith.constant 0 : index
    %c0_13 = arith.constant 0 : index
    %16 = vector.load %arg3[%c1_11, %c0_12, %c0_13] : memref<6x1x128xf32, #tpu.memory_space<vmem>>, vector<1x1x128xf32>
    %17 = vector.shape_cast %16 : vector<1x1x128xf32> to vector<1x128xf32>
    %18 = vector.broadcast %17 : vector<1x128xf32> to vector<8x128xf32>
    %19 = arith.addf %15, %18 : vector<8x128xf32>
    %cst_14 = arith.constant 0.000000e+00 : f32
    %20 = vector.broadcast %cst_14 : f32 to vector<8x128xf32>
    %21 = arith.maximumf %19, %20 : vector<8x128xf32>
    %c2 = arith.constant 2 : index
    %c0_15 = arith.constant 0 : index
    %c0_16 = arith.constant 0 : index
    %22 = vector.load %arg2[%c2, %c0_15, %c0_16] : memref<6x128x128xbf16, #tpu.memory_space<vmem>>, vector<1x128x128xbf16>
    %23 = vector.shape_cast %22 : vector<1x128x128xbf16> to vector<128x128xbf16>
    %24 = arith.truncf %21 : vector<8x128xf32> to vector<8x128xbf16>
    %cst_17 = arith.constant dense<0.000000e+00> : vector<8x128xf32>
    %25 = tpu.matmul %24, %23, %cst_17 {dimension_numbers = #tpu.dot_dimension_numbers<[1], [0], [0], [1], [0, 0, 1, 1], [], []>} : vector<8x128xbf16>, vector<128x128xbf16>, vector<8x128xf32> -> vector<8x128xf32>
    %c2_18 = arith.constant 2 : index
    %c0_19 = arith.constant 0 : index
    %c0_20 = arith.constant 0 : index
    %26 = vector.load %arg3[%c2_18, %c0_19, %c0_20] : memref<6x1x128xf32, #tpu.memory_space<vmem>>, vector<1x1x128xf32>
    %27 = vector.shape_cast %26 : vector<1x1x128xf32> to vector<1x128xf32>
    %28 = vector.broadcast %27 : vector<1x128xf32> to vector<8x128xf32>
    %29 = arith.addf %25, %28 : vector<8x128xf32>
    %cst_21 = arith.constant 0.000000e+00 : f32
    %30 = vector.broadcast %cst_21 : f32 to vector<8x128xf32>
    %31 = arith.maximumf %29, %30 : vector<8x128xf32>
    %c3 = arith.constant 3 : index
    %c0_22 = arith.constant 0 : index
    %c0_23 = arith.constant 0 : index
    %32 = vector.load %arg2[%c3, %c0_22, %c0_23] : memref<6x128x128xbf16, #tpu.memory_space<vmem>>, vector<1x128x128xbf16>
    %33 = vector.shape_cast %32 : vector<1x128x128xbf16> to vector<128x128xbf16>
    %34 = arith.truncf %31 : vector<8x128xf32> to vector<8x128xbf16>
    %cst_24 = arith.constant dense<0.000000e+00> : vector<8x128xf32>
    %35 = tpu.matmul %34, %33, %cst_24 {dimension_numbers = #tpu.dot_dimension_numbers<[1], [0], [0], [1], [0, 0, 1, 1], [], []>} : vector<8x128xbf16>, vector<128x128xbf16>, vector<8x128xf32> -> vector<8x128xf32>
    %c3_25 = arith.constant 3 : index
    %c0_26 = arith.constant 0 : index
    %c0_27 = arith.constant 0 : index
    %36 = vector.load %arg3[%c3_25, %c0_26, %c0_27] : memref<6x1x128xf32, #tpu.memory_space<vmem>>, vector<1x1x128xf32>
    %37 = vector.shape_cast %36 : vector<1x1x128xf32> to vector<1x128xf32>
    %38 = vector.broadcast %37 : vector<1x128xf32> to vector<8x128xf32>
    %39 = arith.addf %35, %38 : vector<8x128xf32>
    %cst_28 = arith.constant 0.000000e+00 : f32
    %40 = vector.broadcast %cst_28 : f32 to vector<8x128xf32>
    %41 = arith.maximumf %39, %40 : vector<8x128xf32>
    %c4 = arith.constant 4 : index
    %c0_29 = arith.constant 0 : index
    %c0_30 = arith.constant 0 : index
    %42 = vector.load %arg2[%c4, %c0_29, %c0_30] : memref<6x128x128xbf16, #tpu.memory_space<vmem>>, vector<1x128x128xbf16>
    %43 = vector.shape_cast %42 : vector<1x128x128xbf16> to vector<128x128xbf16>
    %44 = arith.truncf %41 : vector<8x128xf32> to vector<8x128xbf16>
    %cst_31 = arith.constant dense<0.000000e+00> : vector<8x128xf32>
    %45 = tpu.matmul %44, %43, %cst_31 {dimension_numbers = #tpu.dot_dimension_numbers<[1], [0], [0], [1], [0, 0, 1, 1], [], []>} : vector<8x128xbf16>, vector<128x128xbf16>, vector<8x128xf32> -> vector<8x128xf32>
    %c4_32 = arith.constant 4 : index
    %c0_33 = arith.constant 0 : index
    %c0_34 = arith.constant 0 : index
    %46 = vector.load %arg3[%c4_32, %c0_33, %c0_34] : memref<6x1x128xf32, #tpu.memory_space<vmem>>, vector<1x1x128xf32>
    %47 = vector.shape_cast %46 : vector<1x1x128xf32> to vector<1x128xf32>
    %48 = vector.broadcast %47 : vector<1x128xf32> to vector<8x128xf32>
    %49 = arith.addf %45, %48 : vector<8x128xf32>
    %cst_35 = arith.constant 0.000000e+00 : f32
    %50 = vector.broadcast %cst_35 : f32 to vector<8x128xf32>
    %51 = arith.maximumf %49, %50 : vector<8x128xf32>
    %c5 = arith.constant 5 : index
    %c0_36 = arith.constant 0 : index
    %c0_37 = arith.constant 0 : index
    %52 = vector.load %arg2[%c5, %c0_36, %c0_37] : memref<6x128x128xbf16, #tpu.memory_space<vmem>>, vector<1x128x128xbf16>
    %53 = vector.shape_cast %52 : vector<1x128x128xbf16> to vector<128x128xbf16>
    %54 = arith.truncf %51 : vector<8x128xf32> to vector<8x128xbf16>
    %cst_38 = arith.constant dense<0.000000e+00> : vector<8x128xf32>
    %55 = tpu.matmul %54, %53, %cst_38 {dimension_numbers = #tpu.dot_dimension_numbers<[1], [0], [0], [1], [0, 0, 1, 1], [], []>} : vector<8x128xbf16>, vector<128x128xbf16>, vector<8x128xf32> -> vector<8x128xf32>
    %c5_39 = arith.constant 5 : index
    %c0_40 = arith.constant 0 : index
    %c0_41 = arith.constant 0 : index
    %56 = vector.load %arg3[%c5_39, %c0_40, %c0_41] : memref<6x1x128xf32, #tpu.memory_space<vmem>>, vector<1x1x128xf32>
    %57 = vector.shape_cast %56 : vector<1x1x128xf32> to vector<1x128xf32>
    %58 = vector.broadcast %57 : vector<1x128xf32> to vector<8x128xf32>
    %59 = arith.addf %55, %58 : vector<8x128xf32>
    %60 = vector.extract_strided_slice %59 {offsets = [0, 0], sizes = [8, 8], strides = [1, 1]} : vector<8x128xf32> to vector<8x8xf32>
    %c0_42 = arith.constant 0 : index
    %c0_43 = arith.constant 0 : index
    %61 = vector.load %arg4[%c0_42, %c0_43] : memref<8x8xf32, #tpu.memory_space<vmem>>, vector<8x8xf32>
    tpu.vector_store %arg4[%c0_42, %c0_43], %60 {strides = array<i32>} : memref<8x8xf32, #tpu.memory_space<vmem>>, vector<8x8xf32>,
    return
  }
  func.func @transform_0(%arg0: i32) -> (i32, i32) {
    %c0_i32 = arith.constant 0 : i32
    %c0_i32_0 = arith.constant 0 : i32
    return %arg0, %c0_i32 : i32, i32
  }
  func.func @transform_1(%arg0: i32) -> (i32, i32, i32) {
    %c0_i32 = arith.constant 0 : i32
    %c0_i32_0 = arith.constant 0 : i32
    %c0_i32_1 = arith.constant 0 : i32
    %c0_i32_2 = arith.constant 0 : i32
    return %c0_i32, %c0_i32_0, %c0_i32_1 : i32, i32, i32
  }
  func.func @transform_2(%arg0: i32) -> (i32, i32, i32) {
    %c0_i32 = arith.constant 0 : i32
    %c0_i32_0 = arith.constant 0 : i32
    %c0_i32_1 = arith.constant 0 : i32
    %c0_i32_2 = arith.constant 0 : i32
    return %c0_i32, %c0_i32_0, %c0_i32_1 : i32, i32, i32
  }
  func.func @transform_3(%arg0: i32) -> (i32, i32) {
    %c0_i32 = arith.constant 0 : i32
    %c0_i32_0 = arith.constant 0 : i32
    return %arg0, %c0_i32 : i32, i32
  }
}

</mosaic_0001>

<llo_original>
// kernel: actor_critic_forward.1
$region0: #{actor_critic_forward.1}
  #allocation0 [shape = 'u32[]', space=smem, size = 0x4, offset = 0x4, fixed_abs, tag = 'smem constant byte address 0x4 - core index']
  #allocation1 [shape = 'u32[144,128]{1,0:T(1,128)}', space=vmem, size = 0x12000, scoped, tag = 'internal scratch']
  %s0 = inlined_call_operand.vmem [shape: f32[16,16], index: 0, kind: input, shape index: {}]
  %s1 = inlined_call_operand.hbm [shape: bf16[6,128,128], index: 1, kind: input, shape index: {}]
  %s2 = inlined_call_operand.vmem [shape: f32[6,1,128], index: 2, kind: input, shape index: {}]
  %s3 = inlined_call_operand.vmem [shape: f32[16,8], index: 3, kind: output, shape index: {}]
  %s4 = sld [smem:[#allocation0]]
  $region49: #{actor_critic_forward.1} parent=0
    _
  %s6 = ssub.s32 1, %s4
  %s7 = scalar_select 0, %s6, %s4
  $region1: #{actor_critic_forward.1} parent=0
    #allocation2 [shape = 'u8[196608]{0}', space=vmem, size = 0x30000, scoped, tag = 'input window, operand 1, single buffered']
    #allocation3 [shape = 's32[2]{0}', space=sflag, size = 0x8, scoped, tag = 'scoped memory for actor_critic_forward.1']
    %8 = vsyncpa [#allocation3], 0
    loop: start=0, step=1, limit=4
    $region2: #{actor_critic_forward.1} parent=1 // loop_pre_header
      _
    $region3: #{actor_critic_forward.1} parent=1 // loop_header
      %s10 = sphi 0, %s14
      %p11 = scmp.ge.s32.totalorder %s10, 4
      %s20 = sphi 0, %s22
      %s23 = sphi 0, %s20
      %s24 = sphi 0, %s23
      %s40 = sphi 0, %s24
      %s44 = sphi 0, %s44
      %s46 = sphi 0, %s44
      %s47 = sphi 0, %s46
      %s61 = sphi 0, %s47
      %s65 = sphi 0, %s65
      %s67 = sphi 0, %s65
      %s68 = sphi 0, %s67
      %s82 = sphi 0, %s68
      %s88 = sphi 0, %s90
      %s91 = sphi 0, %s88
      %s92 = sphi 0, %s91
      %s108 = sphi 0, %s92
    $region4: #{actor_critic_forward.1} parent=1 // loop_header_branch
      %13 = sbr.rel (%p11) target = $region8
    $region5: #{actor_critic_forward.1} parent=1 // loop_body
      %s15 = ssub.s32 %s10, 1
      %s16 = ssub.s32 %s10, 2
      %s17 = sadd.s32 %s10, 1
      %s18 = ssub.s32 %s10, %s17
      %p19 = scmp.eq.s32.totalorder %s18, 0
      %s21 = sadd.s32 %s20, 1
      %s22 = scalar_select %p19, %s20, %s21
      %p25 = pneg %p19
      %p26 = scmp.eq.s32.totalorder %s10, 1
      %p27 = por %p25, %p26
      %p28 = scmp.ne.s32.totalorder %s20, %s23
      %p29 = scmp.eq.s32.totalorder %s10, 0
      %p30 = por %p28, %p29
      %p31 = scmp.ne.s32.totalorder %s20, %s23
      %p32 = scmp.eq.s32.totalorder %s15, 1
      %p33 = por %p31, %p32
      %p34 = scmp.ne.s32.totalorder %s23, %s24
      %p35 = scmp.eq.s32.totalorder %s15, 0
      %p36 = por %p34, %p35
      %p37 = scmp.ne.s32.totalorder %s23, %s24
      %p38 = scmp.eq.s32.totalorder %s16, 1
      %p39 = por %p37, %p38
      %p41 = scmp.ne.s32.totalorder %s24, %s40
      %p42 = scmp.eq.s32.totalorder %s16, 0
      %p43 = por %p41, %p42
      %s45 = sadd.s32 %s44, 1
      %p48 = scmp.eq.s32.totalorder %s10, 1
      %p49 = scmp.ne.s32.totalorder %s44, %s46
      %p50 = scmp.eq.s32.totalorder %s10, 0
      %p51 = por %p49, %p50
      %p52 = scmp.ne.s32.totalorder %s44, %s46
      %p53 = scmp.eq.s32.totalorder %s15, 1
      %p54 = por %p52, %p53
      %p55 = scmp.ne.s32.totalorder %s46, %s47
      %p56 = scmp.eq.s32.totalorder %s15, 0
      %p57 = por %p55, %p56
      %p58 = scmp.ne.s32.totalorder %s46, %s47
      %p59 = scmp.eq.s32.totalorder %s16, 1
      %p60 = por %p58, %p59
      %p62 = scmp.ne.s32.totalorder %s47, %s61
      %p63 = scmp.eq.s32.totalorder %s16, 0
      %p64 = por %p62, %p63
      %s66 = sadd.s32 %s65, 1
      %p69 = scmp.eq.s32.totalorder %s10, 1
      %p70 = scmp.ne.s32.totalorder %s65, %s67
      %p71 = scmp.eq.s32.totalorder %s10, 0
      %p72 = por %p70, %p71
      %p73 = scmp.ne.s32.totalorder %s65, %s67
      %p74 = scmp.eq.s32.totalorder %s15, 1
      %p75 = por %p73, %p74
      %p76 = scmp.ne.s32.totalorder %s67, %s68
      %p77 = scmp.eq.s32.totalorder %s15, 0
      %p78 = por %p76, %p77
      %p79 = scmp.ne.s32.totalorder %s67, %s68
      %p80 = scmp.eq.s32.totalorder %s16, 1
      %p81 = por %p79, %p80
      %p83 = scmp.ne.s32.totalorder %s68, %s82
      %p84 = scmp.eq.s32.totalorder %s16, 0
      %p85 = por %p83, %p84
      %s86 = ssub.s32 %s10, %s17
      %p87 = scmp.eq.s32.totalorder %s86, 0
      %s89 = sadd.s32 %s88, 1
      %s90 = scalar_select %p87, %s88, %s89
      %p93 = pneg %p87
      %p94 = scmp.eq.s32.totalorder %s10, 1
      %p95 = por %p93, %p94
      %p96 = scmp.ne.s32.totalorder %s88, %s91
      %p97 = scmp.eq.s32.totalorder %s10, 0
      %p98 = por %p96, %p97
      %p99 = scmp.ne.s32.totalorder %s88, %s91
      %p100 = scmp.eq.s32.totalorder %s15, 1
      %p101 = por %p99, %p100
      %p102 = scmp.ne.s32.totalorder %s91, %s92
      %p103 = scmp.eq.s32.totalorder %s15, 0
      %p104 = por %p102, %p103
      %p105 = scmp.ne.s32.totalorder %s91, %s92
      %p106 = scmp.eq.s32.totalorder %s16, 1
      %p107 = por %p105, %p106
      %p109 = scmp.ne.s32.totalorder %s92, %s108
      %p110 = scmp.eq.s32.totalorder %s16, 0
      %p111 = por %p109, %p110
      %p112 = scmp.le.s32.totalorder 1, %s10
      %p113 = scmp.lt.s32.totalorder %s10, 3
      %p114 = pnand %p112, %p113
      %p115 = pneg %p114
      // Predicated region
      $region9: #{actor_critic_forward.1} parent=5 // pred_check
        _
      $region10: #{actor_critic_forward.1} parent=5 // pred_check_branch
        %117 = sbr.rel (%p114) target = $region12
      $region11: #{actor_critic_forward.1} parent=5 // pred_region
        %s118 = ssub.s32 %s10, 1
        // Predicated region
        $region13: #{actor_critic_forward.1} parent=11 // pred_check
          %p119 = pneg %p57
        $region14: #{actor_critic_forward.1} parent=11 // pred_check_branch
          %121 = sbr.rel (%p119) target = $region16
        $region15: #{actor_critic_forward.1} parent=11 // pred_region
          %s123 = ssub.s32 6144, 6144
          %124 = vsyncadd [#allocation3], %s123
          %s125 = sshll.u32 [#allocation2], 4
          %s126 = int_to_ptr.vmem [resolvable:$true] %s125
          %131 = dma.hbm_to_vmem [thread:$0]  %s1, 6144, %s126, [#allocation3], 64, 64, 4
        $region16: #{actor_critic_forward.1} parent=11 // pred_fallthru
          _
        // Predicated region
        $region17: #{actor_critic_forward.1} parent=11 // pred_check
          %p132 = pneg %p78
        $region18: #{actor_critic_forward.1} parent=11 // pred_check_branch
          %134 = sbr.rel (%p132) target = $region20
        $region19: #{actor_critic_forward.1} parent=11 // pred_region
          _
        $region20: #{actor_critic_forward.1} parent=11 // pred_fallthru
          _
      $region12: #{actor_critic_forward.1} parent=5 // pred_fallthru
        _
      %p135 = scmp.lt.s32.totalorder %s10, 2
      // Predicated region
      $region21: #{actor_critic_forward.1} parent=5 // pred_check
        %p136 = pneg %p135
      $region22: #{actor_critic_forward.1} parent=5 // pred_check_branch
        %138 = sbr.rel (%p136) target = $region24
      $region23: #{actor_critic_forward.1} parent=5 // pred_region
        // Predicated region
        $region25: #{actor_critic_forward.1} parent=23 // pred_check
          %p139 = pneg %p30
        $region26: #{actor_critic_forward.1} parent=23 // pred_check_branch
          %141 = sbr.rel (%p139) target = $region28
        $region27: #{actor_critic_forward.1} parent=23 // pred_region
          %p142 = scmp.lt.s32.totalorder %s10, 1
          %s143 = scalar_select %p142, %s10, 1
          %s144 = smul.addr %s143, 8
          %s145 = scalar_lea.vmem %s0, %s144
        $region28: #{actor_critic_forward.1} parent=23 // pred_fallthru
          _
      $region24: #{actor_critic_forward.1} parent=5 // pred_fallthru
        _
      %p146 = scmp.le.s32.totalorder 1, %s10
      %p147 = scmp.lt.s32.totalorder %s10, 3
      %p148 = pnand %p146, %p147
      %p149 = pneg %p148
      // Predicated region
      $region29: #{actor_critic_forward.1} parent=5 // pred_check
        _
      $region30: #{actor_critic_forward.1} parent=5 // pred_check_branch
        %151 = sbr.rel (%p148) target = $region32
      $region31: #{actor_critic_forward.1} parent=5 // pred_region
        %s152 = ssub.s32 %s10, 1
        // Predicated region
        $region33: #{actor_critic_forward.1} parent=31 // pred_check
          %p153 = pneg %p57
        $region34: #{actor_critic_forward.1} parent=31 // pred_check_branch
          %155 = sbr.rel (%p153) target = $region36
        $region35: #{actor_critic_forward.1} parent=31 // pred_region
          %156 = dma.done [#allocation3], 6144
        $region36: #{actor_critic_forward.1} parent=31 // pred_fallthru
          _
        %p157 = scmp.lt.s32.totalorder %s15, 1
        %s158 = scalar_select %p157, %s15, 1
        %s159 = smul.addr %s158, 8
        %s160 = scalar_lea.vmem %s0, %s159
        %p161 = pneg %p36
        %p162 = pneg %p33
        %p163 = pneg %p57
        %p164 = pneg %p54
        %p165 = pneg %p78
        %p166 = pneg %p75
        %p167 = pneg %p104
        %p168 = pneg %p101
        %p169 = scmp.lt.s32.totalorder %s15, 1
        %s170 = scalar_select %p169, %s15, 1
        %s171 = smul.addr %s170, 8
        %s172 = scalar_lea.vmem %s3, %s171
        %p173 = scmp.lt.s32.totalorder %s15, 1
        %s174 = scalar_select %p173, %s15, 1
        %s175 = smul.addr %s174, 8
        %s176 = scalar_lea.vmem %s0, %s175
        %p177 = scmp.lt.s32.totalorder %s15, 1
        %s178 = scalar_select %p177, %s15, 1
        %s179 = smul.addr %s178, 8
        %s180 = scalar_lea.vmem %s3, %s179
        %v182 = vld [vmem:[%s176] sm:$0xff]
        %v183 = vld [vmem:[#allocation2] sm:$0xf]
        %v184 = vld [vmem:[#allocation2 + $0x4] sm:$0xf]
        %v185 = vpack.c.bf16 %v182, %v182
        %v186 = vld [vmem:[%s2] sm:$0x1]
        %v188 = vlaneseq
        %v189 = vshrl.u32 %v188, 7
        %v190 = vsub.s32 0, %v189
        %v191 = vrot.slane %v186, %v190
        %v195 = vunpack.c.l.b16 %v183
        %v196 = vunpack.c.l.b16 %v184
        %v197 = vpack.c.b16 %v196, %v195
        %vm199 = vcmask 130048
        %v201 = vsel %vm199, %v185, 0
        %203 = vmatprep.subr.bf16.mxu0 0
        %204 = vmatpush1.bf16.msra.mxu0 %v197
        %205 = vmatprep.subr.bf16.mxu0 0
        %206 = vmatpush1.bf16.msra.mxu0 0
        %207 = vmatprep.subr.bf16.mxu0 0
        %208 = vmatpush1.bf16.msra.mxu0 0
        %209 = vmatprep.subr.bf16.mxu0 0
        %210 = vmatpush1.bf16.msra.mxu0 0
        %211 = vmatprep.subr.bf16.mxu0 0
        %212 = vmatpush1.bf16.msra.mxu0 0
        %213 = vmatprep.subr.bf16.mxu0 0
        %214 = vmatpush1.bf16.msra.mxu0 0
        %215 = vmatprep.subr.bf16.mxu0 0
        %216 = vmatpush1.bf16.msra.mxu0 0
        %217 = vmatprep.subr.bf16.mxu0 0
        %218 = vmatpush1.bf16.msra.mxu0 0
        %219 = vmatprep.subr.bf16.mxu0 0
        %220 = vmatpush1.bf16.msra.mxu0 0
        %221 = vmatprep.subr.bf16.mxu0 0
        %222 = vmatpush1.bf16.msra.mxu0 0
        %223 = vmatprep.subr.bf16.mxu0 0
        %224 = vmatpush1.bf16.msra.mxu0 0
        %225 = vmatprep.subr.bf16.mxu0 0
        %226 = vmatpush1.bf16.msra.mxu0 0
        %227 = vmatprep.subr.bf16.mxu0 0
        %228 = vmatpush1.bf16.msra.mxu0 0
        %229 = vmatprep.subr.bf16.mxu0 0
        %230 = vmatpush1.bf16.msra.mxu0 0
        %231 = vmatprep.subr.bf16.mxu0 0
        %232 = vmatpush1.bf16.msra.mxu0 0
        %233 = vmatprep.subr.bf16.mxu0 0
        %234 = vmatpush1.bf16.msra.mxu0 0
        %235 = vmatprep.mubr.bf16.mxu0 0
        %236 = vmatmul.mubr.bf16.gmra.mrb[0].mxu0 %v201
        %v237 = vpop.f32.mrb[0].mxu0
        %v238 = vadd.f32 %v191, %v237
        %v239 = vpop.f32.mrb[0].mxu0
        %v240 = vpop.f32.mrb[0].mxu0
        %v241 = vpop.f32.mrb[0].mxu0
        %242 = vdwg.mxu0
        %v243 = vmax.f32 %v238, 0.0
        %s244 = scalar_lea.vmem [#allocation2], 64
        %v245 = vld [vmem:[%s244] sm:$0xf]
        %v246 = vld [vmem:[%s244 + $0x4] sm:$0xf]
        %v247 = vld [vmem:[%s244 + $0x8] sm:$0xf]
        %v248 = vld [vmem:[%s244 + $0xc] sm:$0xf]
        %v249 = vld [vmem:[%s244 + $0x10] sm:$0xf]
        %v250 = vld [vmem:[%s244 + $0x14] sm:$0xf]
        %v251 = vld [vmem:[%s244 + $0x18] sm:$0xf]
        %v252 = vld [vmem:[%s244 + $0x1c] sm:$0xf]
        %v253 = vld [vmem:[%s244 + $0x20] sm:$0xf]
        %v254 = vld [vmem:[%s244 + $0x24] sm:$0xf]
        %v255 = vld [vmem:[%s244 + $0x28] sm:$0xf]
        %v256 = vld [vmem:[%s244 + $0x2c] sm:$0xf]
        %v257 = vld [vmem:[%s244 + $0x30] sm:$0xf]
        %v258 = vld [vmem:[%s244 + $0x34] sm:$0xf]
        %v259 = vld [vmem:[%s244 + $0x38] sm:$0xf]
        %v260 = vld [vmem:[%s244 + $0x3c] sm:$0xf]
        %v261 = vpack.c.bf16 %v243, %v243
        %s262 = scalar_lea.vmem %s2, 1
        %v263 = vld [vmem:[%s262] sm:$0x1]
        %v265 = vlaneseq
        %v266 = vshrl.u32 %v265, 7
        %v267 = vsub.s32 0, %v266
        %v268 = vrot.slane %v263, %v267
        %v286 = vunpack.c.l.b16 %v245
        %v287 = vunpack.c.l.b16 %v246
        %v288 = vunpack.c.l.b16 %v247
        %v289 = vunpack.c.l.b16 %v248
        %v290 = vunpack.c.l.b16 %v249
        %v291 = vunpack.c.l.b16 %v250
        %v292 = vunpack.c.l.b16 %v251
        %v293 = vunpack.c.l.b16 %v252
        %v294 = vunpack.c.l.b16 %v253
        %v295 = vunpack.c.l.b16 %v254
        %v296 = vunpack.c.l.b16 %v255
        %v297 = vunpack.c.l.b16 %v256
        %v298 = vunpack.c.l.b16 %v257
        %v299 = vunpack.c.l.b16 %v258
        %v300 = vunpack.c.l.b16 %v259
        %v301 = vunpack.c.l.b16 %v260
        %v302 = vpack.c.b16 %v287, %v286
        %v303 = vpack.c.b16 %v289, %v288
        %v304 = vpack.c.b16 %v291, %v290
        %v305 = vpack.c.b16 %v293, %v292
        %v306 = vpack.c.b16 %v295, %v294
        %v307 = vpack.c.b16 %v297, %v296
        %v308 = vpack.c.b16 %v299, %v298
        %v309 = vpack.c.b16 %v301, %v300
        %318 = vmatprep.subr.bf16.mxu0 0
        %319 = vmatpush1.bf16.msra.mxu0 %v302
        %320 = vmatprep.subr.bf16.mxu0 0
        %321 = vmatpush1.bf16.msra.mxu0 %v303
        %322 = vmatprep.subr.bf16.mxu0 0
        %323 = vmatpush1.bf16.msra.mxu0 %v304
        %324 = vmatprep.subr.bf16.mxu0 0
        %325 = vmatpush1.bf16.msra.mxu0 %v305
        %326 = vmatprep.subr.bf16.mxu0 0
        %327 = vmatpush1.bf16.msra.mxu0 %v306
        %328 = vmatprep.subr.bf16.mxu0 0
        %329 = vmatpush1.bf16.msra.mxu0 %v307
        %330 = vmatprep.subr.bf16.mxu0 0
        %331 = vmatpush1.bf16.msra.mxu0 %v308
        %332 = vmatprep.subr.bf16.mxu0 0
        %333 = vmatpush1.bf16.msra.mxu0 %v309
        %334 = vmatprep.subr.bf16.mxu0 0
        %335 = vmatpush1.bf16.msra.mxu0 0
        %336 = vmatprep.subr.bf16.mxu0 0
        %337 = vmatpush1.bf16.msra.mxu0 0
        %338 = vmatprep.subr.bf16.mxu0 0
        %339 = vmatpush1.bf16.msra.mxu0 0
        %340 = vmatprep.subr.bf16.mxu0 0
        %341 = vmatpush1.bf16.msra.mxu0 0
        %342 = vmatprep.subr.bf16.mxu0 0
        %343 = vmatpush1.bf16.msra.mxu0 0
        %344 = vmatprep.subr.bf16.mxu0 0
        %345 = vmatpush1.bf16.msra.mxu0 0
        %346 = vmatprep.subr.bf16.mxu0 0
        %347 = vmatpush1.bf16.msra.mxu0 0
        %348 = vmatprep.subr.bf16.mxu0 0
        %349 = vmatpush1.bf16.msra.mxu0 0
        %350 = vmatprep.mubr.bf16.mxu0 0
        %351 = vmatmul.mubr.bf16.gmra.mrb[0].mxu0 %v261
        %v352 = vpop.f32.mrb[0].mxu0
        %v353 = vadd.f32 %v268, %v352
        %v354 = vpop.f32.mrb[0].mxu0
        %v355 = vpop.f32.mrb[0].mxu0
        %v356 = vpop.f32.mrb[0].mxu0
        %357 = vdwg.mxu0
        %v358 = vmax.f32 %v353, 0.0
        %s359 = scalar_lea.vmem [#allocation2], 128
        %v360 = vld [vmem:[%s359] sm:$0xf]
        %v361 = vld [vmem:[%s359 + $0x4] sm:$0xf]
        %v362 = vld [vmem:[%s359 + $0x8] sm:$0xf]
        %v363 = vld [vmem:[%s359 + $0xc] sm:$0xf]
        %v364 = vld [vmem:[%s359 + $0x10] sm:$0xf]
        %v365 = vld [vmem:[%s359 + $0x14] sm:$0xf]
        %v366 = vld [vmem:[%s359 + $0x18] sm:$0xf]
        %v367 = vld [vmem:[%s359 + $0x1c] sm:$0xf]
        %v368 = vld [vmem:[%s359 + $0x20] sm:$0xf]
        %v369 = vld [vmem:[%s359 + $0x24] sm:$0xf]
        %v370 = vld [vmem:[%s359 + $0x28] sm:$0xf]
        %v371 = vld [vmem:[%s359 + $0x2c] sm:$0xf]
        %v372 = vld [vmem:[%s359 + $0x30] sm:$0xf]
        %v373 = vld [vmem:[%s359 + $0x34] sm:$0xf]
        %v374 = vld [vmem:[%s359 + $0x38] sm:$0xf]
        %v375 = vld [vmem:[%s359 + $0x3c] sm:$0xf]
        %v376 = vpack.c.bf16 %v358, %v358
        %s377 = scalar_lea.vmem %s2, 2
        %v378 = vld [vmem:[%s377] sm:$0x1]
        %v380 = vlaneseq
        %v381 = vshrl.u32 %v380, 7
        %v382 = vsub.s32 0, %v381
        %v383 = vrot.slane %v378, %v382
        %v401 = vunpack.c.l.b16 %v360
        %v402 = vunpack.c.l.b16 %v361
        %v403 = vunpack.c.l.b16 %v362
        %v404 = vunpack.c.l.b16 %v363
        %v405 = vunpack.c.l.b16 %v364
        %v406 = vunpack.c.l.b16 %v365
        %v407 = vunpack.c.l.b16 %v366
        %v408 = vunpack.c.l.b16 %v367
        %v409 = vunpack.c.l.b16 %v368
        %v410 = vunpack.c.l.b16 %v369
        %v411 = vunpack.c.l.b16 %v370
        %v412 = vunpack.c.l.b16 %v371
        %v413 = vunpack.c.l.b16 %v372
        %v414 = vunpack.c.l.b16 %v373
        %v415 = vunpack.c.l.b16 %v374
        %v416 = vunpack.c.l.b16 %v375
        %v417 = vpack.c.b16 %v402, %v401
        %v418 = vpack.c.b16 %v404, %v403
        %v419 = vpack.c.b16 %v406, %v405
        %v420 = vpack.c.b16 %v408, %v407
        %v421 = vpack.c.b16 %v410, %v409
        %v422 = vpack.c.b16 %v412, %v411
        %v423 = vpack.c.b16 %v414, %v413
        %v424 = vpack.c.b16 %v416, %v415
        %433 = vmatprep.subr.bf16.mxu0 0
        %434 = vmatpush1.bf16.msra.mxu0 %v417
        %435 = vmatprep.subr.bf16.mxu0 0
        %436 = vmatpush1.bf16.msra.mxu0 %v418
        %437 = vmatprep.subr.bf16.mxu0 0
        %438 = vmatpush1.bf16.msra.mxu0 %v419
        %439 = vmatprep.subr.bf16.mxu0 0
        %440 = vmatpush1.bf16.msra.mxu0 %v420
        %441 = vmatprep.subr.bf16.mxu0 0
        %442 = vmatpush1.bf16.msra.mxu0 %v421
        %443 = vmatprep.subr.bf16.mxu0 0
        %444 = vmatpush1.bf16.msra.mxu0 %v422
        %445 = vmatprep.subr.bf16.mxu0 0
        %446 = vmatpush1.bf16.msra.mxu0 %v423
        %447 = vmatprep.subr.bf16.mxu0 0
        %448 = vmatpush1.bf16.msra.mxu0 %v424
        %449 = vmatprep.subr.bf16.mxu0 0
        %450 = vmatpush1.bf16.msra.mxu0 0
        %451 = vmatprep.subr.bf16.mxu0 0
        %452 = vmatpush1.bf16.msra.mxu0 0
        %453 = vmatprep.subr.bf16.mxu0 0
        %454 = vmatpush1.bf16.msra.mxu0 0
        %455 = vmatprep.subr.bf16.mxu0 0
        %456 = vmatpush1.bf16.msra.mxu0 0
        %457 = vmatprep.subr.bf16.mxu0 0
        %458 = vmatpush1.bf16.msra.mxu0 0
        %459 = vmatprep.subr.bf16.mxu0 0
        %460 = vmatpush1.bf16.msra.mxu0 0
        %461 = vmatprep.subr.bf16.mxu0 0
        %462 = vmatpush1.bf16.msra.mxu0 0
        %463 = vmatprep.subr.bf16.mxu0 0
        %464 = vmatpush1.bf16.msra.mxu0 0
        %465 = vmatprep.mubr.bf16.mxu0 0
        %466 = vmatmul.mubr.bf16.gmra.mrb[0].mxu0 %v376
        %v467 = vpop.f32.mrb[0].mxu0
        %v468 = vadd.f32 %v383, %v467
        %v469 = vpop.f32.mrb[0].mxu0
        %v470 = vpop.f32.mrb[0].mxu0
        %v471 = vpop.f32.mrb[0].mxu0
        %472 = vdwg.mxu0
        %v473 = vmax.f32 %v468, 0.0
        %s474 = scalar_lea.vmem [#allocation2], 192
        %v475 = vld [vmem:[%s474] sm:$0xf]
        %v476 = vld [vmem:[%s474 + $0x4] sm:$0xf]
        %v477 = vld [vmem:[%s474 + $0x8] sm:$0xf]
        %v478 = vld [vmem:[%s474 + $0xc] sm:$0xf]
        %v479 = vld [vmem:[%s474 + $0x10] sm:$0xf]
        %v480 = vld [vmem:[%s474 + $0x14] sm:$0xf]
        %v481 = vld [vmem:[%s474 + $0x18] sm:$0xf]
        %v482 = vld [vmem:[%s474 + $0x1c] sm:$0xf]
        %v483 = vld [vmem:[%s474 + $0x20] sm:$0xf]
        %v484 = vld [vmem:[%s474 + $0x24] sm:$0xf]
        %v485 = vld [vmem:[%s474 + $0x28] sm:$0xf]
        %v486 = vld [vmem:[%s474 + $0x2c] sm:$0xf]
        %v487 = vld [vmem:[%s474 + $0x30] sm:$0xf]
        %v488 = vld [vmem:[%s474 + $0x34] sm:$0xf]
        %v489 = vld [vmem:[%s474 + $0x38] sm:$0xf]
        %v490 = vld [vmem:[%s474 + $0x3c] sm:$0xf]
        %v491 = vpack.c.bf16 %v473, %v473
        %s492 = scalar_lea.vmem %s2, 3
        %v493 = vld [vmem:[%s492] sm:$0x1]
        %v495 = vlaneseq
        %v496 = vshrl.u32 %v495, 7
        %v497 = vsub.s32 0, %v496
        %v498 = vrot.slane %v493, %v497
        %v516 = vunpack.c.l.b16 %v475
        %v517 = vunpack.c.l.b16 %v476
        %v518 = vunpack.c.l.b16 %v477
        %v519 = vunpack.c.l.b16 %v478
        %v520 = vunpack.c.l.b16 %v479
        %v521 = vunpack.c.l.b16 %v480
        %v522 = vunpack.c.l.b16 %v481
        %v523 = vunpack.c.l.b16 %v482
        %v524 = vunpack.c.l.b16 %v483
        %v525 = vunpack.c.l.b16 %v484
        %v526 = vunpack.c.l.b16 %v485
        %v527 = vunpack.c.l.b16 %v486
        %v528 = vunpack.c.l.b16 %v487
        %v529 = vunpack.c.l.b16 %v488
        %v530 = vunpack.c.l.b16 %v489
        %v531 = vunpack.c.l.b16 %v490
        %v532 = vpack.c.b16 %v517, %v516
        %v533 = vpack.c.b16 %v519, %v518
        %v534 = vpack.c.b16 %v521, %v520
        %v535 = vpack.c.b16 %v523, %v522
        %v536 = vpack.c.b16 %v525, %v524
        %v537 = vpack.c.b16 %v527, %v526
        %v538 = vpack.c.b16 %v529, %v528
        %v539 = vpack.c.b16 %v531, %v530
        %548 = vmatprep.subr.bf16.mxu0 0
        %549 = vmatpush1.bf16.msra.mxu0 %v532
        %550 = vmatprep.subr.bf16.mxu0 0
        %551 = vmatpush1.bf16.msra.mxu0 %v533
        %552 = vmatprep.subr.bf16.mxu0 0
        %553 = vmatpush1.bf16.msra.mxu0 %v534
        %554 = vmatprep.subr.bf16.mxu0 0
        %555 = vmatpush1.bf16.msra.mxu0 %v535
        %556 = vmatprep.subr.bf16.mxu0 0
        %557 = vmatpush1.bf16.msra.mxu0 %v536
        %558 = vmatprep.subr.bf16.mxu0 0
        %559 = vmatpush1.bf16.msra.mxu0 %v537
        %560 = vmatprep.subr.bf16.mxu0 0
        %561 = vmatpush1.bf16.msra.mxu0 %v538
        %562 = vmatprep.subr.bf16.mxu0 0
        %563 = vmatpush1.bf16.msra.mxu0 %v539
        %564 = vmatprep.subr.bf16.mxu0 0
        %565 = vmatpush1.bf16.msra.mxu0 0
        %566 = vmatprep.subr.bf16.mxu0 0
        %567 = vmatpush1.bf16.msra.mxu0 0
        %568 = vmatprep.subr.bf16.mxu0 0
        %569 = vmatpush1.bf16.msra.mxu0 0
        %570 = vmatprep.subr.bf16.mxu0 0
        %571 = vmatpush1.bf16.msra.mxu0 0
        %572 = vmatprep.subr.bf16.mxu0 0
        %573 = vmatpush1.bf16.msra.mxu0 0
        %574 = vmatprep.subr.bf16.mxu0 0
        %575 = vmatpush1.bf16.msra.mxu0 0
        %576 = vmatprep.subr.bf16.mxu0 0
        %577 = vmatpush1.bf16.msra.mxu0 0
        %578 = vmatprep.subr.bf16.mxu0 0
        %579 = vmatpush1.bf16.msra.mxu0 0
        %580 = vmatprep.mubr.bf16.mxu0 0
        %581 = vmatmul.mubr.bf16.gmra.mrb[0].mxu0 %v491
        %v582 = vpop.f32.mrb[0].mxu0
        %v583 = vadd.f32 %v498, %v582
        %v584 = vpop.f32.mrb[0].mxu0
        %v585 = vpop.f32.mrb[0].mxu0
        %v586 = vpop.f32.mrb[0].mxu0
        %587 = vdwg.mxu0
        %v588 = vmax.f32 %v583, 0.0
        %s589 = scalar_lea.vmem [#allocation2], 256
        %v590 = vld [vmem:[%s589] sm:$0xf]
        %v591 = vld [vmem:[%s589 + $0x4] sm:$0xf]
        %v592 = vld [vmem:[%s589 + $0x8] sm:$0xf]
        %v593 = vld [vmem:[%s589 + $0xc] sm:$0xf]
        %v594 = vld [vmem:[%s589 + $0x10] sm:$0xf]
        %v595 = vld [vmem:[%s589 + $0x14] sm:$0xf]
        %v596 = vld [vmem:[%s589 + $0x18] sm:$0xf]
        %v597 = vld [vmem:[%s589 + $0x1c] sm:$0xf]
        %v598 = vld [vmem:[%s589 + $0x20] sm:$0xf]
        %v599 = vld [vmem:[%s589 + $0x24] sm:$0xf]
        %v600 = vld [vmem:[%s589 + $0x28] sm:$0xf]
        %v601 = vld [vmem:[%s589 + $0x2c] sm:$0xf]
        %v602 = vld [vmem:[%s589 + $0x30] sm:$0xf]
        %v603 = vld [vmem:[%s589 + $0x34] sm:$0xf]
        %v604 = vld [vmem:[%s589 + $0x38] sm:$0xf]
        %v605 = vld [vmem:[%s589 + $0x3c] sm:$0xf]
        %v606 = vpack.c.bf16 %v588, %v588
        %s607 = scalar_lea.vmem %s2, 4
        %v608 = vld [vmem:[%s607] sm:$0x1]
        %v610 = vlaneseq
        %v611 = vshrl.u32 %v610, 7
        %v612 = vsub.s32 0, %v611
        %v613 = vrot.slane %v608, %v612
        %v631 = vunpack.c.l.b16 %v590
        %v632 = vunpack.c.l.b16 %v591
        %v633 = vunpack.c.l.b16 %v592
        %v634 = vunpack.c.l.b16 %v593
        %v635 = vunpack.c.l.b16 %v594
        %v636 = vunpack.c.l.b16 %v595
        %v637 = vunpack.c.l.b16 %v596
        %v638 = vunpack.c.l.b16 %v597
        %v639 = vunpack.c.l.b16 %v598
        %v640 = vunpack.c.l.b16 %v599
        %v641 = vunpack.c.l.b16 %v600
        %v642 = vunpack.c.l.b16 %v601
        %v643 = vunpack.c.l.b16 %v602
        %v644 = vunpack.c.l.b16 %v603
        %v645 = vunpack.c.l.b16 %v604
        %v646 = vunpack.c.l.b16 %v605
        %v647 = vpack.c.b16 %v632, %v631
        %v648 = vpack.c.b16 %v634, %v633
        %v649 = vpack.c.b16 %v636, %v635
        %v650 = vpack.c.b16 %v638, %v637
        %v651 = vpack.c.b16 %v640, %v639
        %v652 = vpack.c.b16 %v642, %v641
        %v653 = vpack.c.b16 %v644, %v643
        %v654 = vpack.c.b16 %v646, %v645
        %663 = vmatprep.subr.bf16.mxu0 0
        %664 = vmatpush1.bf16.msra.mxu0 %v647
        %665 = vmatprep.subr.bf16.mxu0 0
        %666 = vmatpush1.bf16.msra.mxu0 %v648
        %667 = vmatprep.subr.bf16.mxu0 0
        %668 = vmatpush1.bf16.msra.mxu0 %v649
        %669 = vmatprep.subr.bf16.mxu0 0
        %670 = vmatpush1.bf16.msra.mxu0 %v650
        %671 = vmatprep.subr.bf16.mxu0 0
        %672 = vmatpush1.bf16.msra.mxu0 %v651
        %673 = vmatprep.subr.bf16.mxu0 0
        %674 = vmatpush1.bf16.msra.mxu0 %v652
        %675 = vmatprep.subr.bf16.mxu0 0
        %676 = vmatpush1.bf16.msra.mxu0 %v653
        %677 = vmatprep.subr.bf16.mxu0 0
        %678 = vmatpush1.bf16.msra.mxu0 %v654
        %679 = vmatprep.subr.bf16.mxu0 0
        %680 = vmatpush1.bf16.msra.mxu0 0
        %681 = vmatprep.subr.bf16.mxu0 0
        %682 = vmatpush1.bf16.msra.mxu0 0
        %683 = vmatprep.subr.bf16.mxu0 0
        %684 = vmatpush1.bf16.msra.mxu0 0
        %685 = vmatprep.subr.bf16.mxu0 0
        %686 = vmatpush1.bf16.msra.mxu0 0
        %687 = vmatprep.subr.bf16.mxu0 0
        %688 = vmatpush1.bf16.msra.mxu0 0
        %689 = vmatprep.subr.bf16.mxu0 0
        %690 = vmatpush1.bf16.msra.mxu0 0
        %691 = vmatprep.subr.bf16.mxu0 0
        %692 = vmatpush1.bf16.msra.mxu0 0
        %693 = vmatprep.subr.bf16.mxu0 0
        %694 = vmatpush1.bf16.msra.mxu0 0
        %695 = vmatprep.mubr.bf16.mxu0 0
        %696 = vmatmul.mubr.bf16.gmra.mrb[0].mxu0 %v606
        %v697 = vpop.f32.mrb[0].mxu0
        %v698 = vadd.f32 %v613, %v697
        %v699 = vpop.f32.mrb[0].mxu0
        %v700 = vpop.f32.mrb[0].mxu0
        %v701 = vpop.f32.mrb[0].mxu0
        %702 = vdwg.mxu0
        %v703 = vmax.f32 %v698, 0.0
        %s704 = scalar_lea.vmem [#allocation2], 320
        %v705 = vld [vmem:[%s704] sm:$0xf]
        %v706 = vld [vmem:[%s704 + $0x4] sm:$0xf]
        %v707 = vld [vmem:[%s704 + $0x8] sm:$0xf]
        %v708 = vld [vmem:[%s704 + $0xc] sm:$0xf]
        %v709 = vld [vmem:[%s704 + $0x10] sm:$0xf]
        %v710 = vld [vmem:[%s704 + $0x14] sm:$0xf]
        %v711 = vld [vmem:[%s704 + $0x18] sm:$0xf]
        %v712 = vld [vmem:[%s704 + $0x1c] sm:$0xf]
        %v713 = vld [vmem:[%s704 + $0x20] sm:$0xf]
        %v714 = vld [vmem:[%s704 + $0x24] sm:$0xf]
        %v715 = vld [vmem:[%s704 + $0x28] sm:$0xf]
        %v716 = vld [vmem:[%s704 + $0x2c] sm:$0xf]
        %v717 = vld [vmem:[%s704 + $0x30] sm:$0xf]
        %v718 = vld [vmem:[%s704 + $0x34] sm:$0xf]
        %v719 = vld [vmem:[%s704 + $0x38] sm:$0xf]
        %v720 = vld [vmem:[%s704 + $0x3c] sm:$0xf]
        %v721 = vpack.c.bf16 %v703, %v703
        %s722 = scalar_lea.vmem %s2, 5
        %v723 = vld [vmem:[%s722] sm:$0x1]
        %v725 = vlaneseq
        %v726 = vshrl.u32 %v725, 7
        %v727 = vsub.s32 0, %v726
        %v728 = vrot.slane %v723, %v727
        %v746 = vunpack.c.l.b16 %v705
        %v747 = vunpack.c.l.b16 %v706
        %v748 = vunpack.c.l.b16 %v707
        %v749 = vunpack.c.l.b16 %v708
        %v750 = vunpack.c.l.b16 %v709
        %v751 = vunpack.c.l.b16 %v710
        %v752 = vunpack.c.l.b16 %v711
        %v753 = vunpack.c.l.b16 %v712
        %v754 = vunpack.c.l.b16 %v713
        %v755 = vunpack.c.l.b16 %v714
        %v756 = vunpack.c.l.b16 %v715
        %v757 = vunpack.c.l.b16 %v716
        %v758 = vunpack.c.l.b16 %v717
        %v759 = vunpack.c.l.b16 %v718
        %v760 = vunpack.c.l.b16 %v719
        %v761 = vunpack.c.l.b16 %v720
        %v762 = vpack.c.b16 %v747, %v746
        %v763 = vpack.c.b16 %v749, %v748
        %v764 = vpack.c.b16 %v751, %v750
        %v765 = vpack.c.b16 %v753, %v752
        %v766 = vpack.c.b16 %v755, %v754
        %v767 = vpack.c.b16 %v757, %v756
        %v768 = vpack.c.b16 %v759, %v758
        %v769 = vpack.c.b16 %v761, %v760
        %778 = vmatprep.subr.bf16.mxu0 0
        %779 = vmatpush1.bf16.msra.mxu0 %v762
        %780 = vmatprep.subr.bf16.mxu0 0
        %781 = vmatpush1.bf16.msra.mxu0 %v763
        %782 = vmatprep.subr.bf16.mxu0 0
        %783 = vmatpush1.bf16.msra.mxu0 %v764
        %784 = vmatprep.subr.bf16.mxu0 0
        %785 = vmatpush1.bf16.msra.mxu0 %v765
        %786 = vmatprep.subr.bf16.mxu0 0
        %787 = vmatpush1.bf16.msra.mxu0 %v766
        %788 = vmatprep.subr.bf16.mxu0 0
        %789 = vmatpush1.bf16.msra.mxu0 %v767
        %790 = vmatprep.subr.bf16.mxu0 0
        %791 = vmatpush1.bf16.msra.mxu0 %v768
        %792 = vmatprep.subr.bf16.mxu0 0
        %793 = vmatpush1.bf16.msra.mxu0 %v769
        %794 = vmatprep.subr.bf16.mxu0 0
        %795 = vmatpush1.bf16.msra.mxu0 0
        %796 = vmatprep.subr.bf16.mxu0 0
        %797 = vmatpush1.bf16.msra.mxu0 0
        %798 = vmatprep.subr.bf16.mxu0 0
        %799 = vmatpush1.bf16.msra.mxu0 0
        %800 = vmatprep.subr.bf16.mxu0 0
        %801 = vmatpush1.bf16.msra.mxu0 0
        %802 = vmatprep.subr.bf16.mxu0 0
        %803 = vmatpush1.bf16.msra.mxu0 0
        %804 = vmatprep.subr.bf16.mxu0 0
        %805 = vmatpush1.bf16.msra.mxu0 0
        %806 = vmatprep.subr.bf16.mxu0 0
        %807 = vmatpush1.bf16.msra.mxu0 0
        %808 = vmatprep.subr.bf16.mxu0 0
        %809 = vmatpush1.bf16.msra.mxu0 0
        %810 = vmatprep.mubr.bf16.mxu0 0
        %811 = vmatmul.mubr.bf16.gmra.mrb[0].mxu0 %v721
        %v812 = vpop.f32.mrb[0].mxu0
        %v813 = vadd.f32 %v728, %v812
        %v814 = vpop.f32.mrb[0].mxu0
        %v815 = vpop.f32.mrb[0].mxu0
        %v816 = vpop.f32.mrb[0].mxu0
        %817 = vdwg.mxu0
        %vm818 = vcmask 64512
        %819 = vst.msk [vmem:[%s180] sm:$0xff] %vm818, %v813
        %p820 = scmp.lt.s32.totalorder %s15, 1
        %s821 = scalar_select %p820, %s15, 1
        %s822 = smul.addr %s821, 8
        %s823 = scalar_lea.vmem %s3, %s822
        // Predicated region
        $region37: #{actor_critic_forward.1} parent=31 // pred_check
          %p824 = pneg %p101
        $region38: #{actor_critic_forward.1} parent=31 // pred_check_branch
          %826 = sbr.rel (%p824) target = $region40
        $region39: #{actor_critic_forward.1} parent=31 // pred_region
          _
        $region40: #{actor_critic_forward.1} parent=31 // pred_fallthru
          _
      $region32: #{actor_critic_forward.1} parent=5 // pred_fallthru
        _
      %p827 = scmp.le.s32.totalorder 2, %s10
      // Predicated region
      $region41: #{actor_critic_forward.1} parent=5 // pred_check
        %p828 = pneg %p827
      $region42: #{actor_critic_forward.1} parent=5 // pred_check_branch
        %830 = sbr.rel (%p828) target = $region44
      $region43: #{actor_critic_forward.1} parent=5 // pred_region
        %s831 = ssub.s32 %s10, 2
        // Predicated region
        $region45: #{actor_critic_forward.1} parent=43 // pred_check
          %p832 = pneg %p107
        $region46: #{actor_critic_forward.1} parent=43 // pred_check_branch
          %834 = sbr.rel (%p832) target = $region48
        $region47: #{actor_critic_forward.1} parent=43 // pred_region
          %p835 = scmp.lt.s32.totalorder %s16, 1
          %s836 = scalar_select %p835, %s16, 1
          %s837 = smul.addr %s836, 8
          %s838 = scalar_lea.vmem %s3, %s837
        $region48: #{actor_critic_forward.1} parent=43 // pred_fallthru
          _
      $region44: #{actor_critic_forward.1} parent=5 // pred_fallthru
        _
    $region6: #{actor_critic_forward.1} parent=1 // loop_footer
      %s14 = sadd.s32 1, %s10
    $region7: #{actor_critic_forward.1} parent=1 // loop_footer_branch
      %9 = sbr.rel target = $region3
    $region8: #{actor_critic_forward.1} parent=1 // loop_exit
      _
    %839 = vsyncpa [#allocation3], 1
    %s840 = scalar_lea.sflag [#allocation3], 1
    %841 = vsyncpa %s840, 1

</llo_original>
